<compile_context>
chip_gen: v5e
topology: v5e:2x2
jax: 0.10.0
libtpu: 0.0.40
codegen_flags: <defaults>
</compile_context>

<pallas_src>
import functools
import math

import jax
import jax.numpy as jnp
from jax.experimental import pallas as pl
from jax.experimental.pallas import tpu as pltpu


def _build_pe_table(d_model: int, max_len: int = 1000) -> jnp.ndarray:
    """Reproduces the PyTorch buffer: shape (max_len, 1, d_model), float32."""
    position = jnp.arange(max_len, dtype=jnp.float32)[:, None]            # (L, 1)
    div_term = jnp.exp(
        jnp.arange(0, d_model, 2, dtype=jnp.float32)
        * (-math.log(10000.0) / d_model)
    )                                                                      # (D/2,)
    angles = position * div_term                                           # (L, D/2)
    # Interleave sin/cos exactly like pe[:, 0::2] = sin, pe[:, 1::2] = cos.
    pe = jnp.stack([jnp.sin(angles), jnp.cos(angles)], axis=-1)            # (L, D/2, 2)
    pe = pe.reshape(max_len, d_model)                                      # (L, D)
    return pe[:, None, :]                                                  # (L, 1, D)


def _pe_add_kernel(x_ref, pe_ref, o_ref, *, batch: int, d_model: int):
    # x_ref / o_ref: (TS, B*D) lane-dense tiles; pe_ref: (TS, D) in x's dtype.
    pe = pe_ref[...]                                   # load once, reuse B times
    if batch == 1:
        o_ref[...] = x_ref[...] + pe
    else:
        # Per-batch lane-chunk add: avoids in-kernel lane concat / reshape
        # relayouts; B small masked stores are free under the HBM-DMA bound.
        for b in range(batch):                         # static trip count
            sl = pl.ds(b * d_model, d_model)
            o_ref[:, sl] = x_ref[:, sl] + pe


def _pick_tile_rows(S: int, padded_row_bytes: int,
                    target_tile_bytes: int = 1 << 20, max_rows: int = 512) -> int:
    """Rows per grid step: as large as possible while one (padded) x tile stays
    under ~1 MiB -> (x + out + pe) x 2 pipeline buffers stays well under the
    default scoped-VMEM limit on v5e/v6e/v7x."""
    rows = (target_tile_bytes // max(1, padded_row_bytes)) // 8 * 8
    rows = max(8, min(max_rows, rows))
    if S <= rows:
        return S          # single full block (also the tiny-input fast path)
    return rows


def positional_encoding_forward(x: jnp.ndarray, pe: jnp.ndarray) -> jnp.ndarray:
    """x: (S, B, D); pe: (max_len, 1, D) canonical buffer. Returns x + pe[:S]."""
    S, B, D = x.shape
    assert pe.shape[0] >= S and pe.shape[-1] == D
    BD = B * D
    itemsize = x.dtype.itemsize

    # Lane-dense 2-D view of x (free, contiguous reshape — layout plumbing only).
    x2 = x.reshape(S, BD)
    # Compact per-row pe slab in x's dtype (no batch tiling in the wrapper).
    pe2 = pe[:S, 0, :].astype(x.dtype)                                     # (S, D)

    # Tile sizing against VMEM (account for lane padding up to 128).
    padded_row_bytes = (-(-BD // 128) * 128) * itemsize
    ts = _pick_tile_rows(S, padded_row_bytes)
    grid = (pl.cdiv(S, ts),)

    cost = pl.CostEstimate(
        flops=S * BD,
        transcendentals=0,
        bytes_accessed=2 * S * BD * itemsize + S * D * itemsize,  # x, out, pe
    )

    kernel = functools.partial(_pe_add_kernel, batch=B, d_model=D)

    out2 = pl.pallas_call(
        kernel,
        out_shape=jax.ShapeDtypeStruct((S, BD), x.dtype),
        grid_spec=pltpu.PrefetchScalarGridSpec(
            num_scalar_prefetch=0,
            grid=grid,
            in_specs=[
                pl.BlockSpec((ts, BD), lambda i: (i, 0)),   # x tile
                pl.BlockSpec((ts, D), lambda i: (i, 0)),    # pe tile (compact)
            ],
            out_specs=pl.BlockSpec((ts, BD), lambda i: (i, 0)),
        ),
        compiler_params=pltpu.CompilerParams(
            dimension_semantics=("parallel",),   # seq axis shards across v7x's 2 TCs
        ),
        cost_estimate=cost,
    )(x2, pe2)

    return out2.reshape(S, B, D)


if __name__ == "__main__":
    D_MODEL, MAX_LEN = 32, 1000
    pe = _build_pe_table(D_MODEL, MAX_LEN)

    key = jax.random.PRNGKey(0)
    k_small, k_big = jax.random.split(key)

    # Small shape consistent with the module (seq=8, batch=2, d_model=32).
    SEQ, BATCH = 8, 2
    x_small = jax.random.normal(k_small, (SEQ, BATCH, D_MODEL), dtype=jnp.float32)
    out_small = jax.block_until_ready(positional_encoding_forward(x_small, pe))
    ref_small = x_small + pe[:SEQ]
    assert out_small.shape == (SEQ, BATCH, D_MODEL)
    assert jnp.allclose(out_small, ref_small, atol=1e-6), "small-shape mismatch"

    # Larger sequence exercises the multi-step grid + partial last block.
    x_big = jax.random.normal(k_big, (MAX_LEN, BATCH, D_MODEL), dtype=jnp.float32)
    out_big = jax.block_until_ready(positional_encoding_forward(x_big, pe))
    ref_big = x_big + pe[:MAX_LEN]
    assert jnp.allclose(out_big, ref_big, atol=1e-6), "large-shape mismatch"

    print("KERNEL_OK")
</pallas_src>

<mosaic_0001>
module attributes {stable_mosaic.version = 11 : i64} {
  func.func @_pe_add_kernel(%arg0: i32, %arg1: memref<8x64xf32, #tpu.memory_space<vmem>>, %arg2: memref<8x32xf32, #tpu.memory_space<vmem>>, %arg3: memref<8x64xf32, #tpu.memory_space<vmem>>) attributes {dimension_semantics = [#tpu.dimension_semantics<parallel>], iteration_bounds = array<i64: 1>, scalar_prefetch = 0 : i64, scratch_operands = 0 : i64, tpu.core_type = #tpu.core_type<tc>, window_params = [{transform_indices = @transform_0, window_bounds = array<i64: 8, 64>}, {transform_indices = @transform_1, window_bounds = array<i64: 8, 32>}, {transform_indices = @transform_2, window_bounds = array<i64: 8, 64>}]} {
    %c0 = arith.constant 0 : index
    %c0_0 = arith.constant 0 : index
    %0 = vector.load %arg2[%c0, %c0_0] : memref<8x32xf32, #tpu.memory_space<vmem>>, vector<8x32xf32>
    %c0_1 = arith.constant 0 : index
    %c0_2 = arith.constant 0 : index
    %1 = vector.load %arg1[%c0_1, %c0_2] : memref<8x64xf32, #tpu.memory_space<vmem>>, vector<8x32xf32>
    %2 = arith.addf %1, %0 : vector<8x32xf32>
    %c0_3 = arith.constant 0 : index
    %c0_4 = arith.constant 0 : index
    %3 = vector.load %arg3[%c0_3, %c0_4] : memref<8x64xf32, #tpu.memory_space<vmem>>, vector<8x32xf32>
    tpu.vector_store %arg3[%c0_3, %c0_4], %2 {strides = array<i32>} : memref<8x64xf32, #tpu.memory_space<vmem>>, vector<8x32xf32>,
    %c0_5 = arith.constant 0 : index
    %c32 = arith.constant 32 : index
    %4 = vector.load %arg1[%c0_5, %c32] : memref<8x64xf32, #tpu.memory_space<vmem>>, vector<8x32xf32>
    %5 = arith.addf %4, %0 : vector<8x32xf32>
    %c0_6 = arith.constant 0 : index
    %c32_7 = arith.constant 32 : index
    %6 = vector.load %arg3[%c0_6, %c32_7] : memref<8x64xf32, #tpu.memory_space<vmem>>, vector<8x32xf32>
    tpu.vector_store %arg3[%c0_6, %c32_7], %5 {strides = array<i32>} : memref<8x64xf32, #tpu.memory_space<vmem>>, vector<8x32xf32>,
    return
  }
  func.func @transform_0(%arg0: i32) -> (i32, i32) {
    %c0_i32 = arith.constant 0 : i32
    %c0_i32_0 = arith.constant 0 : i32
    return %arg0, %c0_i32 : i32, i32
  }
  func.func @transform_1(%arg0: i32) -> (i32, i32) {
    %c0_i32 = arith.constant 0 : i32
    %c0_i32_0 = arith.constant 0 : i32
    return %arg0, %c0_i32 : i32, i32
  }
  func.func @transform_2(%arg0: i32) -> (i32, i32) {
    %c0_i32 = arith.constant 0 : i32
    %c0_i32_0 = arith.constant 0 : i32
    return %arg0, %c0_i32 : i32, i32
  }
}

</mosaic_0001>

<llo_original>
// kernel: tpu_custom_call.1
$region0: #{tpu_custom_call.1}
  #allocation0 [shape = 'u32[]', space=smem, size = 0x4, offset = 0x4, fixed_abs, tag = 'smem constant byte address 0x4 - core index']
  #allocation1 [shape = 'u32[72,128]{1,0:T(1,128)}', space=vmem, size = 0x9000, scoped, tag = 'internal scratch']
  %s0 = inlined_call_operand.hbm [shape: f32[8,64], index: 0, kind: input, shape index: {}]
  %s1 = inlined_call_operand.hbm [shape: f32[8,32], index: 1, kind: input, shape index: {}]
  %s2 = inlined_call_operand.hbm [shape: f32[8,64], index: 2, kind: output, shape index: {}]
  %s3 = sld [smem:[#allocation0]]
  $region26: #{tpu_custom_call.1} parent=0
    _
  %s5 = ssub.s32 1, %s3
  %s6 = scalar_select 0, %s5, %s3
  $region1: #{tpu_custom_call.1} parent=0
    #allocation2 [shape = 'u8[4096]{0}', space=vmem, size = 0x1000, scoped, tag = 'input window, operand 0, single buffered']
    #allocation3 [shape = 's32[1]{0}', space=sflag, size = 0x4, scoped, tag = 'scoped memory for tpu_custom_call.1']
    #allocation4 [shape = 's32[1]{0}', space=sflag, size = 0x4, scoped, tag = 'scoped memory for tpu_custom_call.1']
    #allocation5 [shape = 'u8[4096]{0}', space=vmem, size = 0x1000, scoped, tag = 'input window, operand 1, single buffered']
    #allocation6 [shape = 's32[1]{0}', space=sflag, size = 0x4, scoped, tag = 'scoped memory for tpu_custom_call.1']
    #allocation7 [shape = 'u8[4096]{0}', space=vmem, size = 0x1000, scoped, tag = 'output window, operand 0, single buffered']
    %7 = vsyncpa [#allocation3], 0
    %8 = vsyncpa [#allocation6], 0
    %9 = vsyncpa [#allocation4], 0
    // Predicated region
    $region2: #{tpu_custom_call.1} parent=1 // pred_check
      _
    $region3: #{tpu_custom_call.1} parent=1 // pred_check_branch
      %11 = sbr.rel (0) target = $region5
    $region4: #{tpu_custom_call.1} parent=1 // pred_region
      %13 = vsyncadd [#allocation3], 0
      %s15 = sshll.u32 %s0, 4
      %s16 = int_to_ptr.hbm [resolvable:$true] %s15
      %s17 = sshll.u32 [#allocation2], 4
      %s18 = int_to_ptr.vmem [resolvable:$true] %s17
      %20 = dma.hbm_to_vmem [thread:$0]  %s16, 128, %s18, [#allocation3]
    $region5: #{tpu_custom_call.1} parent=1 // pred_fallthru
      _
    // Predicated region
    $region6: #{tpu_custom_call.1} parent=1 // pred_check
      _
    $region7: #{tpu_custom_call.1} parent=1 // pred_check_branch
      %22 = sbr.rel (0) target = $region9
    $region8: #{tpu_custom_call.1} parent=1 // pred_region
      %24 = vsyncadd [#allocation6], 0
      %s26 = sshll.u32 %s1, 4
      %s27 = int_to_ptr.hbm [resolvable:$true] %s26
      %s28 = sshll.u32 [#allocation5], 4
      %s29 = int_to_ptr.vmem [resolvable:$true] %s28
      %31 = dma.hbm_to_vmem [thread:$0]  %s27, 128, %s29, [#allocation6]
    $region9: #{tpu_custom_call.1} parent=1 // pred_fallthru
      _
    // Predicated region
    $region10: #{tpu_custom_call.1} parent=1 // pred_check
      _
    $region11: #{tpu_custom_call.1} parent=1 // pred_check_branch
      %33 = sbr.rel (0) target = $region13
    $region12: #{tpu_custom_call.1} parent=1 // pred_region
      %35 = dma.done [#allocation3], 128
    $region13: #{tpu_custom_call.1} parent=1 // pred_fallthru
      _
    // Predicated region
    $region14: #{tpu_custom_call.1} parent=1 // pred_check
      _
    $region15: #{tpu_custom_call.1} parent=1 // pred_check_branch
      %37 = sbr.rel (0) target = $region17
    $region16: #{tpu_custom_call.1} parent=1 // pred_region
      %39 = dma.done [#allocation6], 128
    $region17: #{tpu_custom_call.1} parent=1 // pred_fallthru
      _
    %v40 = vld [vmem:[#allocation5] sm:$0xff]
    %v41 = vld [vmem:[#allocation2] sm:$0xff]
    %v42 = vadd.f32 %v41, %v40
    %vm43 = vcmask 261120
    %44 = vst.msk [vmem:[#allocation7] sm:$0xff] %vm43, %v42
    %v45 = vld [vmem:[#allocation2] sm:$0xff]
    %47 = vrot.lane.b32.xlu0 %v40, 32
    %v48 = vpop.permute.xlu0 %47
    %v50 = vadd.f32 %v45, %v48
    %vm51 = vcmask 523520
    %52 = vst.msk [vmem:[#allocation7] sm:$0xff] %vm51, %v50
    // Predicated region
    $region18: #{tpu_custom_call.1} parent=1 // pred_check
      _
    $region19: #{tpu_custom_call.1} parent=1 // pred_check_branch
      %54 = sbr.rel (0) target = $region21
    $region20: #{tpu_custom_call.1} parent=1 // pred_region
      %56 = vsyncadd [#allocation4], 0
      %s58 = sshll.u32 [#allocation7], 4
      %s59 = int_to_ptr.vmem [resolvable:$true] %s58
      %s60 = sshll.u32 %s2, 4
      %s61 = int_to_ptr.hbm [resolvable:$true] %s60
      %63 = dma.vmem_to_hbm [thread:$0]  %s59, 128, %s61, [#allocation4]
    $region21: #{tpu_custom_call.1} parent=1 // pred_fallthru
      _
    // Predicated region
    $region22: #{tpu_custom_call.1} parent=1 // pred_check
      _
    $region23: #{tpu_custom_call.1} parent=1 // pred_check_branch
      %65 = sbr.rel (0) target = $region25
    $region24: #{tpu_custom_call.1} parent=1 // pred_region
      %67 = dma.done [#allocation4], 128
    $region25: #{tpu_custom_call.1} parent=1 // pred_fallthru
      _
    %68 = vsyncpa [#allocation3], 1
    %69 = vsyncpa [#allocation6], 1
    %70 = vsyncpa [#allocation4], 1

</llo_original>
